<compile_context>
chip_gen: v7x
topology: tpu7x:2x2x1
jax: 0.10.0
libtpu: 0.0.40
codegen_flags: <defaults>
</compile_context>

<pallas_src>
import functools

import jax
import jax.numpy as jnp
from jax.experimental import pallas as pl
from jax.experimental.pallas import tpu as pltpu


_ACCEPTED = ('sum', 'mean', 'prod', 'none')


def _fis_agg_kernel(x_ref, o_ref, *, agg, inv_n):
    """Reduce the last (member) axis of one row tile.

    x_ref : VMEM [tm, N]  input tile
    o_ref : VMEM [tm, 1]  keepdim=True result tile
    """
    x = x_ref[...].astype(jnp.float32)
    n = x.shape[-1]
    if agg == 'prod':
        # Unrolled product over static lane slices: always lowers on Mosaic
        # (cross-lane multiplicative reductions are not guaranteed) and N is
        # small for ANFIS membership/rule dims.
        r = x[:, 0:1]
        for j in range(1, n):
            r = r * x[:, j:j + 1]
    else:
        r = jnp.sum(x, axis=-1, keepdims=True)
        if agg == 'mean':
            r = r * inv_n          # precomputed 1/N multiply, no divide
    o_ref[...] = r.astype(o_ref.dtype)


def _pick_tile_rows(M, N, itemsize, vmem_budget_bytes=4 * 1024 * 1024):
    """Rows per tile: fits a fixed per-buffer VMEM budget, multiple of 8."""
    lane_padded = ((N + 127) // 128) * 128          # lane dim pads to 128
    tm = vmem_budget_bytes // (lane_padded * itemsize)
    tm = min(max(tm, 8), 2048)
    tm = (tm // 8) * 8
    if tm >= M:
        return M                                    # full extent is always legal
    return tm


def _reference_agg(x, agg):
    if agg == 'sum':
        return jnp.sum(x, axis=-1, keepdims=True)
    if agg == 'mean':
        return jnp.mean(x, axis=-1, keepdims=True)
    if agg == 'prod':
        return jnp.prod(x, axis=-1, keepdims=True)
    return x


def fis_aggregate(x, aggregation_function=None, *, use_kernel=None,
                  min_kernel_elems=1 << 16):
    """FISAggregator forward: aggregate x over dim=-1 with keepdim=True."""
    if (isinstance(aggregation_function, str)
            and aggregation_function not in _ACCEPTED):
        raise TypeError(
            f"Unknown aggregation function {aggregation_function}. "
            f"Accepted values are: {list(_ACCEPTED)}")

    if aggregation_function is None or aggregation_function == 'none':
        return x                                     # identity (matches PyTorch lambda)

    orig_shape = x.shape
    N = orig_shape[-1]
    xf = x.reshape(-1, N)
    M = xf.shape[0]

    if use_kernel is None:
        use_kernel = (M * N) >= min_kernel_elems
    if not use_kernel:
        return _reference_agg(x, aggregation_function)

    tm = _pick_tile_rows(M, N, jnp.dtype(x.dtype).itemsize)
    grid = (pl.cdiv(M, tm),)

    kernel = functools.partial(
        _fis_agg_kernel, agg=aggregation_function, inv_n=float(1.0 / N))

    out = pl.pallas_call(
        kernel,
        out_shape=jax.ShapeDtypeStruct((M, 1), x.dtype),
        grid=grid,
        in_specs=[pl.BlockSpec((tm, N), lambda i: (i, 0))],
        out_specs=pl.BlockSpec((tm, 1), lambda i: (i, 0)),
        compiler_params=pltpu.CompilerParams(
            dimension_semantics=("parallel",),
            vmem_limit_bytes=32 * 1024 * 1024,
        ),
    )(xf)

    return out.reshape(*orig_shape[:-1], 1)


if __name__ == "__main__":
    key = jax.random.PRNGKey(0)
    batch, features, n_members = 4, 128, 5           # (batch, features, members)
    x = jax.random.normal(key, (batch, features, n_members), dtype=jnp.float32)

    # Exercise the Pallas kernel for every reducing aggregation.
    for agg in ('sum', 'mean', 'prod'):
        y = fis_aggregate(x, agg, use_kernel=True)
        y = jax.block_until_ready(y)
        assert y.shape == (batch, features, 1), (agg, y.shape)
        y_ref = _reference_agg(x, agg)
        assert jnp.allclose(y, y_ref, atol=1e-6, rtol=1e-5), f"mismatch for {agg}"

    # Identity paths ('none' / None) — no reduction, no kernel needed.
    y_none = jax.block_until_ready(fis_aggregate(x, 'none'))
    assert y_none.shape == x.shape and jnp.array_equal(y_none, x)
    y_dflt = jax.block_until_ready(fis_aggregate(x, None))
    assert jnp.array_equal(y_dflt, x)

    # Auto-dispatch path (tiny problem -> fused pure-JAX) stays correct.
    y_auto = jax.block_until_ready(fis_aggregate(x, 'mean'))
    assert jnp.allclose(y_auto, _reference_agg(x, 'mean'), atol=1e-6, rtol=1e-5)

    print("KERNEL_OK")
</pallas_src>

<mosaic_0001>
module attributes {stable_mosaic.version = 11 : i64} {
  func.func @_fis_agg_kernel(%arg0: i32, %arg1: memref<512x5xf32, #tpu.memory_space<vmem>>, %arg2: memref<512x1xf32, #tpu.memory_space<vmem>>) attributes {dimension_semantics = [#tpu.dimension_semantics<parallel>], iteration_bounds = array<i64: 1>, scalar_prefetch = 0 : i64, scratch_operands = 0 : i64, tpu.core_type = #tpu.core_type<tc>, window_params = [{transform_indices = @transform_0, window_bounds = array<i64: 512, 5>}, {transform_indices = @transform_1, window_bounds = array<i64: 512, 1>}]} {
    %c0 = arith.constant 0 : index
    %c0_0 = arith.constant 0 : index
    %0 = vector.load %arg1[%c0, %c0_0] : memref<512x5xf32, #tpu.memory_space<vmem>>, vector<512x5xf32>
    %cst = arith.constant dense<0.000000e+00> : vector<512xf32>
    %1 = vector.multi_reduction <add>, %0, %cst [1] : vector<512x5xf32> to vector<512xf32>
    %2 = vector.shape_cast %1 : vector<512xf32> to vector<512x1xf32>
    %c0_1 = arith.constant 0 : index
    %c0_2 = arith.constant 0 : index
    %3 = vector.load %arg2[%c0_1, %c0_2] : memref<512x1xf32, #tpu.memory_space<vmem>>, vector<512x1xf32>
    tpu.vector_store %arg2[%c0_1, %c0_2], %2 {strides = array<i32>} : memref<512x1xf32, #tpu.memory_space<vmem>>, vector<512x1xf32>,
    return
  }
  func.func @transform_0(%arg0: i32) -> (i32, i32) {
    %c0_i32 = arith.constant 0 : i32
    %c0_i32_0 = arith.constant 0 : i32
    return %arg0, %c0_i32 : i32, i32
  }
  func.func @transform_1(%arg0: i32) -> (i32, i32) {
    %c0_i32 = arith.constant 0 : i32
    %c0_i32_0 = arith.constant 0 : i32
    return %arg0, %c0_i32 : i32, i32
  }
}

</mosaic_0001>

<llo_original>
// kernel: tpu_custom_call.1
$region0: #{tpu_custom_call.1}
  #allocation0 [shape = 'u32[]', space=smem, size = 0x4, offset = 0x4, fixed_abs, tag = 'smem constant byte address 0x4 - core index']
  #allocation1 [shape = 'u32[144,128]{1,0:T(1,128)}', space=vmem, size = 0x12000, scoped, tag = 'internal scratch']
  %s0 = inlined_call_operand.vmem [shape: f32[512,5], index: 0, kind: input, shape index: {}]
  %s1 = inlined_call_operand.vmem [shape: f32[512,1], index: 1, kind: output, shape index: {}]
  %s2 = sld [smem:[#allocation0]]
  $region14: #{tpu_custom_call.1} parent=0
    _
  %s4 = ssub.s32 1, %s2
  %s5 = scalar_select 0, %s4, %s2
  // Predicated region
  $region2: #{tpu_custom_call.1} parent=0 // pred_check
    _
  $region3: #{tpu_custom_call.1} parent=0 // pred_check_branch
    %7 = sbr.rel (0) target = $region5
  $region4: #{tpu_custom_call.1} parent=0 // pred_region
    _
  $region5: #{tpu_custom_call.1} parent=0 // pred_fallthru
    _
  %v8 = vld [vmem:[%s0] sm:$0xff]
  %v9 = vld [vmem:[%s0 + $0x8] sm:$0xff]
  %v10 = vld [vmem:[%s0 + $0x10] sm:$0xff]
  %v11 = vld [vmem:[%s0 + $0x18] sm:$0xff]
  %v12 = vld [vmem:[%s0 + $0x20] sm:$0xff]
  %v13 = vld [vmem:[%s0 + $0x28] sm:$0xff]
  %v14 = vld [vmem:[%s0 + $0x30] sm:$0xff]
  %v15 = vld [vmem:[%s0 + $0x38] sm:$0xff]
  %v16 = vld [vmem:[%s0 + $0x40] sm:$0xff]
  %v17 = vld [vmem:[%s0 + $0x48] sm:$0xff]
  %v18 = vld [vmem:[%s0 + $0x50] sm:$0xff]
  %v19 = vld [vmem:[%s0 + $0x58] sm:$0xff]
  %v20 = vld [vmem:[%s0 + $0x60] sm:$0xff]
  %v21 = vld [vmem:[%s0 + $0x68] sm:$0xff]
  %v22 = vld [vmem:[%s0 + $0x70] sm:$0xff]
  %v23 = vld [vmem:[%s0 + $0x78] sm:$0xff]
  %v24 = vld [vmem:[%s0 + $0x80] sm:$0xff]
  %v25 = vld [vmem:[%s0 + $0x88] sm:$0xff]
  %v26 = vld [vmem:[%s0 + $0x90] sm:$0xff]
  %v27 = vld [vmem:[%s0 + $0x98] sm:$0xff]
  %v28 = vld [vmem:[%s0 + $0xa0] sm:$0xff]
  %v29 = vld [vmem:[%s0 + $0xa8] sm:$0xff]
  %v30 = vld [vmem:[%s0 + $0xb0] sm:$0xff]
  %v31 = vld [vmem:[%s0 + $0xb8] sm:$0xff]
  %v32 = vld [vmem:[%s0 + $0xc0] sm:$0xff]
  %v33 = vld [vmem:[%s0 + $0xc8] sm:$0xff]
  %v34 = vld [vmem:[%s0 + $0xd0] sm:$0xff]
  %v35 = vld [vmem:[%s0 + $0xd8] sm:$0xff]
  %v36 = vld [vmem:[%s0 + $0xe0] sm:$0xff]
  %v37 = vld [vmem:[%s0 + $0xe8] sm:$0xff]
  %v38 = vld [vmem:[%s0 + $0xf0] sm:$0xff]
  %v39 = vld [vmem:[%s0 + $0xf8] sm:$0xff]
  %v40 = vld [vmem:[%s0 + $0x100] sm:$0xff]
  %v41 = vld [vmem:[%s0 + $0x108] sm:$0xff]
  %v42 = vld [vmem:[%s0 + $0x110] sm:$0xff]
  %v43 = vld [vmem:[%s0 + $0x118] sm:$0xff]
  %v44 = vld [vmem:[%s0 + $0x120] sm:$0xff]
  %v45 = vld [vmem:[%s0 + $0x128] sm:$0xff]
  %v46 = vld [vmem:[%s0 + $0x130] sm:$0xff]
  %v47 = vld [vmem:[%s0 + $0x138] sm:$0xff]
  %v48 = vld [vmem:[%s0 + $0x140] sm:$0xff]
  %v49 = vld [vmem:[%s0 + $0x148] sm:$0xff]
  %v50 = vld [vmem:[%s0 + $0x150] sm:$0xff]
  %v51 = vld [vmem:[%s0 + $0x158] sm:$0xff]
  %v52 = vld [vmem:[%s0 + $0x160] sm:$0xff]
  %v53 = vld [vmem:[%s0 + $0x168] sm:$0xff]
  %v54 = vld [vmem:[%s0 + $0x170] sm:$0xff]
  %v55 = vld [vmem:[%s0 + $0x178] sm:$0xff]
  %v56 = vld [vmem:[%s0 + $0x180] sm:$0xff]
  %v57 = vld [vmem:[%s0 + $0x188] sm:$0xff]
  %v58 = vld [vmem:[%s0 + $0x190] sm:$0xff]
  %v59 = vld [vmem:[%s0 + $0x198] sm:$0xff]
  %v60 = vld [vmem:[%s0 + $0x1a0] sm:$0xff]
  %v61 = vld [vmem:[%s0 + $0x1a8] sm:$0xff]
  %v62 = vld [vmem:[%s0 + $0x1b0] sm:$0xff]
  %v63 = vld [vmem:[%s0 + $0x1b8] sm:$0xff]
  %v64 = vld [vmem:[%s0 + $0x1c0] sm:$0xff]
  %v65 = vld [vmem:[%s0 + $0x1c8] sm:$0xff]
  %v66 = vld [vmem:[%s0 + $0x1d0] sm:$0xff]
  %v67 = vld [vmem:[%s0 + $0x1d8] sm:$0xff]
  %v68 = vld [vmem:[%s0 + $0x1e0] sm:$0xff]
  %v69 = vld [vmem:[%s0 + $0x1e8] sm:$0xff]
  %v70 = vld [vmem:[%s0 + $0x1f0] sm:$0xff]
  %v71 = vld [vmem:[%s0 + $0x1f8] sm:$0xff]
  %vm72 = vcmask 39936
  %v73 = vsel %vm72, %v8, 0.0
  %74 = vadd.xlane.f32.xlu0 %v73
  %v75 = vpop.xlane.xlu0 %74
  %v76 = vsel %vm72, %v9, 0.0
  %77 = vadd.xlane.f32.xlu0 %v76
  %v78 = vpop.xlane.xlu0 %77
  %v79 = vsel %vm72, %v10, 0.0
  %80 = vadd.xlane.f32.xlu0 %v79
  %v81 = vpop.xlane.xlu0 %80
  %v82 = vsel %vm72, %v11, 0.0
  %83 = vadd.xlane.f32.xlu0 %v82
  %v84 = vpop.xlane.xlu0 %83
  %v85 = vsel %vm72, %v12, 0.0
  %86 = vadd.xlane.f32.xlu0 %v85
  %v87 = vpop.xlane.xlu0 %86
  %v88 = vsel %vm72, %v13, 0.0
  %89 = vadd.xlane.f32.xlu0 %v88
  %v90 = vpop.xlane.xlu0 %89
  %v91 = vsel %vm72, %v14, 0.0
  %92 = vadd.xlane.f32.xlu0 %v91
  %v93 = vpop.xlane.xlu0 %92
  %v94 = vsel %vm72, %v15, 0.0
  %95 = vadd.xlane.f32.xlu0 %v94
  %v96 = vpop.xlane.xlu0 %95
  %v97 = vsel %vm72, %v16, 0.0
  %98 = vadd.xlane.f32.xlu0 %v97
  %v99 = vpop.xlane.xlu0 %98
  %v100 = vsel %vm72, %v17, 0.0
  %101 = vadd.xlane.f32.xlu0 %v100
  %v102 = vpop.xlane.xlu0 %101
  %v103 = vsel %vm72, %v18, 0.0
  %104 = vadd.xlane.f32.xlu0 %v103
  %v105 = vpop.xlane.xlu0 %104
  %v106 = vsel %vm72, %v19, 0.0
  %107 = vadd.xlane.f32.xlu0 %v106
  %v108 = vpop.xlane.xlu0 %107
  %v109 = vsel %vm72, %v20, 0.0
  %110 = vadd.xlane.f32.xlu0 %v109
  %v111 = vpop.xlane.xlu0 %110
  %v112 = vsel %vm72, %v21, 0.0
  %113 = vadd.xlane.f32.xlu0 %v112
  %v114 = vpop.xlane.xlu0 %113
  %v115 = vsel %vm72, %v22, 0.0
  %116 = vadd.xlane.f32.xlu0 %v115
  %v117 = vpop.xlane.xlu0 %116
  %v118 = vsel %vm72, %v23, 0.0
  %119 = vadd.xlane.f32.xlu0 %v118
  %v120 = vpop.xlane.xlu0 %119
  %v121 = vsel %vm72, %v24, 0.0
  %122 = vadd.xlane.f32.xlu0 %v121
  %v123 = vpop.xlane.xlu0 %122
  %v124 = vsel %vm72, %v25, 0.0
  %125 = vadd.xlane.f32.xlu0 %v124
  %v126 = vpop.xlane.xlu0 %125
  %v127 = vsel %vm72, %v26, 0.0
  %128 = vadd.xlane.f32.xlu0 %v127
  %v129 = vpop.xlane.xlu0 %128
  %v130 = vsel %vm72, %v27, 0.0
  %131 = vadd.xlane.f32.xlu0 %v130
  %v132 = vpop.xlane.xlu0 %131
  %v133 = vsel %vm72, %v28, 0.0
  %134 = vadd.xlane.f32.xlu0 %v133
  %v135 = vpop.xlane.xlu0 %134
  %v136 = vsel %vm72, %v29, 0.0
  %137 = vadd.xlane.f32.xlu0 %v136
  %v138 = vpop.xlane.xlu0 %137
  %v139 = vsel %vm72, %v30, 0.0
  %140 = vadd.xlane.f32.xlu0 %v139
  %v141 = vpop.xlane.xlu0 %140
  %v142 = vsel %vm72, %v31, 0.0
  %143 = vadd.xlane.f32.xlu0 %v142
  %v144 = vpop.xlane.xlu0 %143
  %v145 = vsel %vm72, %v32, 0.0
  %146 = vadd.xlane.f32.xlu0 %v145
  %v147 = vpop.xlane.xlu0 %146
  %v148 = vsel %vm72, %v33, 0.0
  %149 = vadd.xlane.f32.xlu0 %v148
  %v150 = vpop.xlane.xlu0 %149
  %v151 = vsel %vm72, %v34, 0.0
  %152 = vadd.xlane.f32.xlu0 %v151
  %v153 = vpop.xlane.xlu0 %152
  %v154 = vsel %vm72, %v35, 0.0
  %155 = vadd.xlane.f32.xlu0 %v154
  %v156 = vpop.xlane.xlu0 %155
  %v157 = vsel %vm72, %v36, 0.0
  %158 = vadd.xlane.f32.xlu0 %v157
  %v159 = vpop.xlane.xlu0 %158
  %v160 = vsel %vm72, %v37, 0.0
  %161 = vadd.xlane.f32.xlu0 %v160
  %v162 = vpop.xlane.xlu0 %161
  %v163 = vsel %vm72, %v38, 0.0
  %164 = vadd.xlane.f32.xlu0 %v163
  %v165 = vpop.xlane.xlu0 %164
  %v166 = vsel %vm72, %v39, 0.0
  %167 = vadd.xlane.f32.xlu0 %v166
  %v168 = vpop.xlane.xlu0 %167
  %v169 = vsel %vm72, %v40, 0.0
  %170 = vadd.xlane.f32.xlu0 %v169
  %v171 = vpop.xlane.xlu0 %170
  %v172 = vsel %vm72, %v41, 0.0
  %173 = vadd.xlane.f32.xlu0 %v172
  %v174 = vpop.xlane.xlu0 %173
  %v175 = vsel %vm72, %v42, 0.0
  %176 = vadd.xlane.f32.xlu0 %v175
  %v177 = vpop.xlane.xlu0 %176
  %v178 = vsel %vm72, %v43, 0.0
  %179 = vadd.xlane.f32.xlu0 %v178
  %v180 = vpop.xlane.xlu0 %179
  %v181 = vsel %vm72, %v44, 0.0
  %182 = vadd.xlane.f32.xlu0 %v181
  %v183 = vpop.xlane.xlu0 %182
  %v184 = vsel %vm72, %v45, 0.0
  %185 = vadd.xlane.f32.xlu0 %v184
  %v186 = vpop.xlane.xlu0 %185
  %v187 = vsel %vm72, %v46, 0.0
  %188 = vadd.xlane.f32.xlu0 %v187
  %v189 = vpop.xlane.xlu0 %188
  %v190 = vsel %vm72, %v47, 0.0
  %191 = vadd.xlane.f32.xlu0 %v190
  %v192 = vpop.xlane.xlu0 %191
  %v193 = vsel %vm72, %v48, 0.0
  %194 = vadd.xlane.f32.xlu0 %v193
  %v195 = vpop.xlane.xlu0 %194
  %v196 = vsel %vm72, %v49, 0.0
  %197 = vadd.xlane.f32.xlu0 %v196
  %v198 = vpop.xlane.xlu0 %197
  %v199 = vsel %vm72, %v50, 0.0
  %200 = vadd.xlane.f32.xlu0 %v199
  %v201 = vpop.xlane.xlu0 %200
  %v202 = vsel %vm72, %v51, 0.0
  %203 = vadd.xlane.f32.xlu0 %v202
  %v204 = vpop.xlane.xlu0 %203
  %v205 = vsel %vm72, %v52, 0.0
  %206 = vadd.xlane.f32.xlu0 %v205
  %v207 = vpop.xlane.xlu0 %206
  %v208 = vsel %vm72, %v53, 0.0
  %209 = vadd.xlane.f32.xlu0 %v208
  %v210 = vpop.xlane.xlu0 %209
  %v211 = vsel %vm72, %v54, 0.0
  %212 = vadd.xlane.f32.xlu0 %v211
  %v213 = vpop.xlane.xlu0 %212
  %v214 = vsel %vm72, %v55, 0.0
  %215 = vadd.xlane.f32.xlu0 %v214
  %v216 = vpop.xlane.xlu0 %215
  %v217 = vsel %vm72, %v56, 0.0
  %218 = vadd.xlane.f32.xlu0 %v217
  %v219 = vpop.xlane.xlu0 %218
  %v220 = vsel %vm72, %v57, 0.0
  %221 = vadd.xlane.f32.xlu0 %v220
  %v222 = vpop.xlane.xlu0 %221
  %v223 = vsel %vm72, %v58, 0.0
  %224 = vadd.xlane.f32.xlu0 %v223
  %v225 = vpop.xlane.xlu0 %224
  %v226 = vsel %vm72, %v59, 0.0
  %227 = vadd.xlane.f32.xlu0 %v226
  %v228 = vpop.xlane.xlu0 %227
  %v229 = vsel %vm72, %v60, 0.0
  %230 = vadd.xlane.f32.xlu0 %v229
  %v231 = vpop.xlane.xlu0 %230
  %v232 = vsel %vm72, %v61, 0.0
  %233 = vadd.xlane.f32.xlu0 %v232
  %v234 = vpop.xlane.xlu0 %233
  %v235 = vsel %vm72, %v62, 0.0
  %236 = vadd.xlane.f32.xlu0 %v235
  %v237 = vpop.xlane.xlu0 %236
  %v238 = vsel %vm72, %v63, 0.0
  %239 = vadd.xlane.f32.xlu0 %v238
  %v240 = vpop.xlane.xlu0 %239
  %v241 = vsel %vm72, %v64, 0.0
  %242 = vadd.xlane.f32.xlu0 %v241
  %v243 = vpop.xlane.xlu0 %242
  %v244 = vsel %vm72, %v65, 0.0
  %245 = vadd.xlane.f32.xlu0 %v244
  %v246 = vpop.xlane.xlu0 %245
  %v247 = vsel %vm72, %v66, 0.0
  %248 = vadd.xlane.f32.xlu0 %v247
  %v249 = vpop.xlane.xlu0 %248
  %v250 = vsel %vm72, %v67, 0.0
  %251 = vadd.xlane.f32.xlu0 %v250
  %v252 = vpop.xlane.xlu0 %251
  %v253 = vsel %vm72, %v68, 0.0
  %254 = vadd.xlane.f32.xlu0 %v253
  %v255 = vpop.xlane.xlu0 %254
  %v256 = vsel %vm72, %v69, 0.0
  %257 = vadd.xlane.f32.xlu0 %v256
  %v258 = vpop.xlane.xlu0 %257
  %v259 = vsel %vm72, %v70, 0.0
  %260 = vadd.xlane.f32.xlu0 %v259
  %v261 = vpop.xlane.xlu0 %260
  %v262 = vsel %vm72, %v71, 0.0
  %263 = vadd.xlane.f32.xlu0 %v262
  %v264 = vpop.xlane.xlu0 %263
  %vm265 = vcmask 7168
  %266 = vst.msk [vmem:[%s1] sm:$0xff] %vm265, %v75
  %267 = vst.msk [vmem:[%s1 + $0x8] sm:$0xff] %vm265, %v78
  %268 = vst.msk [vmem:[%s1 + $0x10] sm:$0xff] %vm265, %v81
  %269 = vst.msk [vmem:[%s1 + $0x18] sm:$0xff] %vm265, %v84
  %270 = vst.msk [vmem:[%s1 + $0x20] sm:$0xff] %vm265, %v87
  %271 = vst.msk [vmem:[%s1 + $0x28] sm:$0xff] %vm265, %v90
  %272 = vst.msk [vmem:[%s1 + $0x30] sm:$0xff] %vm265, %v93
  %273 = vst.msk [vmem:[%s1 + $0x38] sm:$0xff] %vm265, %v96
  %274 = vst.msk [vmem:[%s1 + $0x40] sm:$0xff] %vm265, %v99
  %275 = vst.msk [vmem:[%s1 + $0x48] sm:$0xff] %vm265, %v102
  %276 = vst.msk [vmem:[%s1 + $0x50] sm:$0xff] %vm265, %v105
  %277 = vst.msk [vmem:[%s1 + $0x58] sm:$0xff] %vm265, %v108
  %278 = vst.msk [vmem:[%s1 + $0x60] sm:$0xff] %vm265, %v111
  %279 = vst.msk [vmem:[%s1 + $0x68] sm:$0xff] %vm265, %v114
  %280 = vst.msk [vmem:[%s1 + $0x70] sm:$0xff] %vm265, %v117
  %281 = vst.msk [vmem:[%s1 + $0x78] sm:$0xff] %vm265, %v120
  %282 = vst.msk [vmem:[%s1 + $0x80] sm:$0xff] %vm265, %v123
  %283 = vst.msk [vmem:[%s1 + $0x88] sm:$0xff] %vm265, %v126
  %284 = vst.msk [vmem:[%s1 + $0x90] sm:$0xff] %vm265, %v129
  %285 = vst.msk [vmem:[%s1 + $0x98] sm:$0xff] %vm265, %v132
  %286 = vst.msk [vmem:[%s1 + $0xa0] sm:$0xff] %vm265, %v135
  %287 = vst.msk [vmem:[%s1 + $0xa8] sm:$0xff] %vm265, %v138
  %288 = vst.msk [vmem:[%s1 + $0xb0] sm:$0xff] %vm265, %v141
  %289 = vst.msk [vmem:[%s1 + $0xb8] sm:$0xff] %vm265, %v144
  %290 = vst.msk [vmem:[%s1 + $0xc0] sm:$0xff] %vm265, %v147
  %291 = vst.msk [vmem:[%s1 + $0xc8] sm:$0xff] %vm265, %v150
  %292 = vst.msk [vmem:[%s1 + $0xd0] sm:$0xff] %vm265, %v153
  %293 = vst.msk [vmem:[%s1 + $0xd8] sm:$0xff] %vm265, %v156
  %294 = vst.msk [vmem:[%s1 + $0xe0] sm:$0xff] %vm265, %v159
  %295 = vst.msk [vmem:[%s1 + $0xe8] sm:$0xff] %vm265, %v162
  %296 = vst.msk [vmem:[%s1 + $0xf0] sm:$0xff] %vm265, %v165
  %297 = vst.msk [vmem:[%s1 + $0xf8] sm:$0xff] %vm265, %v168
  %298 = vst.msk [vmem:[%s1 + $0x100] sm:$0xff] %vm265, %v171
  %299 = vst.msk [vmem:[%s1 + $0x108] sm:$0xff] %vm265, %v174
  %300 = vst.msk [vmem:[%s1 + $0x110] sm:$0xff] %vm265, %v177
  %301 = vst.msk [vmem:[%s1 + $0x118] sm:$0xff] %vm265, %v180
  %302 = vst.msk [vmem:[%s1 + $0x120] sm:$0xff] %vm265, %v183
  %303 = vst.msk [vmem:[%s1 + $0x128] sm:$0xff] %vm265, %v186
  %304 = vst.msk [vmem:[%s1 + $0x130] sm:$0xff] %vm265, %v189
  %305 = vst.msk [vmem:[%s1 + $0x138] sm:$0xff] %vm265, %v192
  %306 = vst.msk [vmem:[%s1 + $0x140] sm:$0xff] %vm265, %v195
  %307 = vst.msk [vmem:[%s1 + $0x148] sm:$0xff] %vm265, %v198
  %308 = vst.msk [vmem:[%s1 + $0x150] sm:$0xff] %vm265, %v201
  %309 = vst.msk [vmem:[%s1 + $0x158] sm:$0xff] %vm265, %v204
  %310 = vst.msk [vmem:[%s1 + $0x160] sm:$0xff] %vm265, %v207
  %311 = vst.msk [vmem:[%s1 + $0x168] sm:$0xff] %vm265, %v210
  %312 = vst.msk [vmem:[%s1 + $0x170] sm:$0xff] %vm265, %v213
  %313 = vst.msk [vmem:[%s1 + $0x178] sm:$0xff] %vm265, %v216
  %314 = vst.msk [vmem:[%s1 + $0x180] sm:$0xff] %vm265, %v219
  %315 = vst.msk [vmem:[%s1 + $0x188] sm:$0xff] %vm265, %v222
  %316 = vst.msk [vmem:[%s1 + $0x190] sm:$0xff] %vm265, %v225
  %317 = vst.msk [vmem:[%s1 + $0x198] sm:$0xff] %vm265, %v228
  %318 = vst.msk [vmem:[%s1 + $0x1a0] sm:$0xff] %vm265, %v231
  %319 = vst.msk [vmem:[%s1 + $0x1a8] sm:$0xff] %vm265, %v234
  %320 = vst.msk [vmem:[%s1 + $0x1b0] sm:$0xff] %vm265, %v237
  %321 = vst.msk [vmem:[%s1 + $0x1b8] sm:$0xff] %vm265, %v240
  %322 = vst.msk [vmem:[%s1 + $0x1c0] sm:$0xff] %vm265, %v243
  %323 = vst.msk [vmem:[%s1 + $0x1c8] sm:$0xff] %vm265, %v246
  %324 = vst.msk [vmem:[%s1 + $0x1d0] sm:$0xff] %vm265, %v249
  %325 = vst.msk [vmem:[%s1 + $0x1d8] sm:$0xff] %vm265, %v252
  %326 = vst.msk [vmem:[%s1 + $0x1e0] sm:$0xff] %vm265, %v255
  %327 = vst.msk [vmem:[%s1 + $0x1e8] sm:$0xff] %vm265, %v258
  %328 = vst.msk [vmem:[%s1 + $0x1f0] sm:$0xff] %vm265, %v261
  %329 = vst.msk [vmem:[%s1 + $0x1f8] sm:$0xff] %vm265, %v264
  // Predicated region
  $region6: #{tpu_custom_call.1} parent=0 // pred_check
    _
  $region7: #{tpu_custom_call.1} parent=0 // pred_check_branch
    %331 = sbr.rel (0) target = $region9
  $region8: #{tpu_custom_call.1} parent=0 // pred_region
    _
  $region9: #{tpu_custom_call.1} parent=0 // pred_fallthru
    _
  // Predicated region
  $region10: #{tpu_custom_call.1} parent=0 // pred_check
    _
  $region11: #{tpu_custom_call.1} parent=0 // pred_check_branch
    %333 = sbr.rel (0) target = $region13
  $region12: #{tpu_custom_call.1} parent=0 // pred_region
    _
  $region13: #{tpu_custom_call.1} parent=0 // pred_fallthru
    _

</llo_original>
